<compile_context>
chip_gen: v5e
topology: v5e:2x2
jax: 0.10.0
libtpu: 0.0.40
codegen_flags: <defaults>
</compile_context>

<pallas_src>
import jax
import jax.numpy as jnp
from jax.experimental import pallas as pl
from jax.experimental.pallas import tpu as pltpu


# --------------------------------------------------------------------------
# Kernel
# --------------------------------------------------------------------------
def grouping_conv_kernel(x_ref, w_ref, out_ref):
    # x_ref  : (bb, C_in,  THW)   lane-dense last dim
    # w_ref  : (C_out, C_in)      folded dense weight (same block every step)
    # out_ref: (bb, C_out, THW)
    w = w_ref[...]                      # native dtype (f32 or bf16) -> MXU directly
    bb = x_ref.shape[0]

    def compute(b):
        y = jnp.dot(w, x_ref[b], preferred_element_type=jnp.float32)  # (C_out, THW)
        out_ref[b] = y.astype(out_ref.dtype)

    if bb <= 4:
        # small static unroll: cheap, fully visible to the LLO scheduler
        for b in range(bb):
            compute(b)
    else:
        # visible loop bounds vreg live ranges (avoids spills at large bb)
        def body(b, carry):
            compute(b)
            return carry
        jax.lax.fori_loop(0, bb, body, 0)


# --------------------------------------------------------------------------
# Wrapper helpers
# --------------------------------------------------------------------------
def _expand_grouped(w2d, groups, c_in):
    """(C_out, C_in//g) grouped 1x1-conv weight -> dense block-diagonal (C_out, C_in)."""
    c_out, cig = w2d.shape
    assert cig * groups == c_in, "groups must divide in_channels"
    assert c_out % groups == 0, "groups must divide out_channels"
    cog = c_out // groups
    w_r = w2d.reshape(groups, cog, cig)
    eye = jnp.eye(groups, dtype=w2d.dtype)
    dense = jnp.einsum('gij,gh->gihj', w_r, eye)      # zero outside own group
    return dense.reshape(c_out, c_in)


def _tpu_vmem_and_cores():
    """Best-effort (VMEM bytes per TensorCore, has-2-TensorCores) for this chip."""
    kind = ""
    try:
        kind = jax.devices()[0].device_kind.lower()
    except Exception:
        pass
    if "v7" in kind:                       # v7x: 64 MiB VMEM per TC, 2 TCs/chip
        return 64 << 20, True
    two_tc = any(s in kind for s in ("v4", "v5p"))   # megacore parts
    return 128 << 20, two_tc               # v5e/v6e: 128 MiB, 1 TC


def _pick_blocks(n, hw, c_in, c_out, itemsize, budget, want_two_steps):
    """Pick (batch block bb, spatial block thw) so the double-buffered in+out
    blocks fit `budget` bytes.  Prefer batch blocking with the full spatial
    extent; fall back to lane-dense spatial tiles (multiples of 128)."""
    per_pos = (c_in + c_out) * itemsize            # in+out bytes per spatial position

    def fits(bb, thw):
        return 2 * bb * per_pos * thw <= budget    # x2: double buffering

    if fits(1, hw):
        best = 1
        for bb in range(1, n + 1):
            if n % bb:
                continue
            if not fits(bb, hw):
                continue
            # only enforce >=2 grid steps on 2-TensorCore hardware
            if want_two_steps and n >= 2 and n // bb < 2:
                continue
            best = bb
        return best, hw

    # Single image too large: tile H*W in lane-dense multiples of 128.
    tiles = [t for t in range(128, hw, 128) if hw % t == 0]
    fitting = [t for t in tiles if fits(1, t)]
    if fitting:
        return 1, max(fitting)
    if tiles:
        return 1, min(tiles)        # smallest aligned tile; vmem_limit gives headroom
    return 1, hw                    # H*W not 128-divisible: full-dim block (correct)


# --------------------------------------------------------------------------
# Wrapper
# --------------------------------------------------------------------------
def grouping_conv(q, w1, w2, w3, groups, *, block_batch=None, block_hw=None):
    """q: (N, C_in, H, W); w_i: (C_out, C_in // groups[i]) (1x1 kernels squeezed)."""
    n, c_in, h, w = q.shape
    c_out = w1.shape[0]
    hw = h * w

    # Fold the three grouped convs into one dense channel matrix (done once).
    # Keep the weight in the activation dtype so bf16 inputs hit the MXU as bf16.
    w_eff = (_expand_grouped(w1, groups[0], c_in)
             + _expand_grouped(w2, groups[1], c_in)
             + _expand_grouped(w3, groups[2], c_in)).astype(q.dtype)

    # Lane-dense view: last dim H*W.
    x_flat = q.reshape(n, c_in, hw)

    # Per-generation VMEM sizing.
    vmem_phys, two_tc = _tpu_vmem_and_cores()
    vmem_limit = (vmem_phys * 3) // 4          # scoped limit; headroom for scratch
    block_budget = vmem_limit // 2             # budget for double-buffered in+out blocks

    if block_batch is None or block_hw is None:
        bb_auto, thw_auto = _pick_blocks(n, hw, c_in, c_out, q.dtype.itemsize,
                                         block_budget, want_two_steps=two_tc)
        block_batch = block_batch if block_batch is not None else bb_auto
        block_hw = block_hw if block_hw is not None else thw_auto
    bb, thw = block_batch, block_hw
    assert n % bb == 0, "block_batch must divide the batch size"
    assert hw % thw == 0, "block_hw must divide H*W"
    assert thw == hw or thw % 128 == 0, "spatial tile must stay lane-dense"

    cost = pl.CostEstimate(
        flops=2 * n * c_out * c_in * hw,
        bytes_accessed=q.dtype.itemsize * n * (c_in + c_out) * hw
                       + w_eff.dtype.itemsize * c_out * c_in,
        transcendentals=0,
    )

    out_flat = pl.pallas_call(
        grouping_conv_kernel,
        out_shape=jax.ShapeDtypeStruct((n, c_out, hw), q.dtype),
        grid_spec=pltpu.PrefetchScalarGridSpec(
            num_scalar_prefetch=0,
            grid=(n // bb, hw // thw),
            in_specs=[
                pl.BlockSpec((bb, c_in, thw), lambda i, j: (i, 0, j)),   # activations
                pl.BlockSpec((c_out, c_in), lambda i, j: (0, 0)),        # folded weight
            ],
            out_specs=pl.BlockSpec((bb, c_out, thw), lambda i, j: (i, 0, j)),
        ),
        compiler_params=pltpu.CompilerParams(
            dimension_semantics=("parallel", "parallel"),
            vmem_limit_bytes=int(vmem_limit)),
        cost_estimate=cost,
    )(x_flat, w_eff)

    return out_flat.reshape(n, c_out, h, w)


# --------------------------------------------------------------------------
# Pure-JAX reference: three grouped 1x1 convs, summed (PyTorch semantics)
# --------------------------------------------------------------------------
def grouping_conv_ref(q, w1, w2, w3, groups):
    def gconv(x, wk, g):
        return jax.lax.conv_general_dilated(
            x, wk, window_strides=(1, 1), padding='VALID',
            dimension_numbers=('NCHW', 'OIHW', 'NCHW'),
            feature_group_count=g)
    return (gconv(q, w1, groups[0])
            + gconv(q, w2, groups[1])
            + gconv(q, w3, groups[2]))


if __name__ == "__main__":
    # Shapes consistent with GroupingConv(in_channel=32, out_channel=32, N=(1,2,4))
    N_batch, C_in, C_out, H, W = 2, 32, 32, 16, 16     # H*W = 256 (lane-dense)
    groups = (1, 2, 4)

    key = jax.random.PRNGKey(0)
    kq, k1, k2, k3 = jax.random.split(key, 4)

    q = jax.random.normal(kq, (N_batch, C_in, H, W), dtype=jnp.float32)
    # PyTorch Conv2d weight shapes: (C_out, C_in // g, 1, 1), no bias
    w1 = jax.random.normal(k1, (C_out, C_in // groups[0], 1, 1), jnp.float32) * 0.1
    w2 = jax.random.normal(k2, (C_out, C_in // groups[1], 1, 1), jnp.float32) * 0.1
    w3 = jax.random.normal(k3, (C_out, C_in // groups[2], 1, 1), jnp.float32) * 0.1

    out = grouping_conv(q, w1[:, :, 0, 0], w2[:, :, 0, 0], w3[:, :, 0, 0], groups)
    out = jax.block_until_ready(out)

    ref = grouping_conv_ref(q, w1, w2, w3, groups)
    assert out.shape == (N_batch, C_out, H, W)
    assert jnp.allclose(out, ref, atol=1e-4, rtol=1e-4), "mismatch vs reference"

    print("KERNEL_OK")
</pallas_src>

<mosaic_0001>
module attributes {stable_mosaic.version = 11 : i64} {
  func.func @grouping_conv_kernel(%arg0: i32, %arg1: i32, %arg2: memref<2x32x256xf32, #tpu.memory_space<vmem>>, %arg3: memref<32x32xf32, #tpu.memory_space<vmem>>, %arg4: memref<2x32x256xf32, #tpu.memory_space<vmem>>) attributes {dimension_semantics = [#tpu.dimension_semantics<parallel>, #tpu.dimension_semantics<parallel>], iteration_bounds = array<i64: 1, 1>, scalar_prefetch = 0 : i64, scratch_operands = 0 : i64, tpu.core_type = #tpu.core_type<tc>, window_params = [{transform_indices = @transform_0, window_bounds = array<i64: 2, 32, 256>}, {pipeline_mode = #tpu.pipeline_mode<synchronous>, transform_indices = @transform_1, window_bounds = array<i64: 32, 32>}, {transform_indices = @transform_2, window_bounds = array<i64: 2, 32, 256>}]} {
    %c0 = arith.constant 0 : index
    %c0_0 = arith.constant 0 : index
    %0 = vector.load %arg3[%c0, %c0_0] : memref<32x32xf32, #tpu.memory_space<vmem>>, vector<32x32xf32>
    %c0_1 = arith.constant 0 : index
    %c0_2 = arith.constant 0 : index
    %c0_3 = arith.constant 0 : index
    %1 = vector.load %arg2[%c0_1, %c0_2, %c0_3] : memref<2x32x256xf32, #tpu.memory_space<vmem>>, vector<1x32x256xf32>
    %2 = vector.shape_cast %1 : vector<1x32x256xf32> to vector<32x256xf32>
    %cst = arith.constant dense<0.000000e+00> : vector<32x256xf32>
    %3 = tpu.matmul %0, %2, %cst {dimension_numbers = #tpu.dot_dimension_numbers<[1], [0], [0], [1], [0, 0, 1, 1], [], []>} : vector<32x32xf32>, vector<32x256xf32>, vector<32x256xf32> -> vector<32x256xf32>
    %c0_4 = arith.constant 0 : index
    %c0_5 = arith.constant 0 : index
    %c0_6 = arith.constant 0 : index
    %4 = vector.load %arg4[%c0_4, %c0_5, %c0_6] : memref<2x32x256xf32, #tpu.memory_space<vmem>>, vector<1x32x256xf32>
    %5 = vector.shape_cast %4 : vector<1x32x256xf32> to vector<32x256xf32>
    %6 = vector.shape_cast %3 : vector<32x256xf32> to vector<1x32x256xf32>
    tpu.vector_store %arg4[%c0_4, %c0_5, %c0_6], %6 {strides = array<i32>} : memref<2x32x256xf32, #tpu.memory_space<vmem>>, vector<1x32x256xf32>,
    %c1 = arith.constant 1 : index
    %c0_7 = arith.constant 0 : index
    %c0_8 = arith.constant 0 : index
    %7 = vector.load %arg2[%c1, %c0_7, %c0_8] : memref<2x32x256xf32, #tpu.memory_space<vmem>>, vector<1x32x256xf32>
    %8 = vector.shape_cast %7 : vector<1x32x256xf32> to vector<32x256xf32>
    %cst_9 = arith.constant dense<0.000000e+00> : vector<32x256xf32>
    %9 = tpu.matmul %0, %8, %cst_9 {dimension_numbers = #tpu.dot_dimension_numbers<[1], [0], [0], [1], [0, 0, 1, 1], [], []>} : vector<32x32xf32>, vector<32x256xf32>, vector<32x256xf32> -> vector<32x256xf32>
    %c1_10 = arith.constant 1 : index
    %c0_11 = arith.constant 0 : index
    %c0_12 = arith.constant 0 : index
    %10 = vector.load %arg4[%c1_10, %c0_11, %c0_12] : memref<2x32x256xf32, #tpu.memory_space<vmem>>, vector<1x32x256xf32>
    %11 = vector.shape_cast %10 : vector<1x32x256xf32> to vector<32x256xf32>
    %12 = vector.shape_cast %9 : vector<32x256xf32> to vector<1x32x256xf32>
    tpu.vector_store %arg4[%c1_10, %c0_11, %c0_12], %12 {strides = array<i32>} : memref<2x32x256xf32, #tpu.memory_space<vmem>>, vector<1x32x256xf32>,
    return
  }
  func.func @transform_0(%arg0: i32, %arg1: i32) -> (i32, i32, i32) {
    %c0_i32 = arith.constant 0 : i32
    %c0_i32_0 = arith.constant 0 : i32
    return %arg0, %c0_i32, %arg1 : i32, i32, i32
  }
  func.func @transform_1(%arg0: i32, %arg1: i32) -> (i32, i32) {
    %c0_i32 = arith.constant 0 : i32
    %c0_i32_0 = arith.constant 0 : i32
    %c0_i32_1 = arith.constant 0 : i32
    return %c0_i32, %c0_i32_0 : i32, i32
  }
  func.func @transform_2(%arg0: i32, %arg1: i32) -> (i32, i32, i32) {
    %c0_i32 = arith.constant 0 : i32
    %c0_i32_0 = arith.constant 0 : i32
    return %arg0, %c0_i32, %arg1 : i32, i32, i32
  }
}

</mosaic_0001>

<llo_original>
// kernel: tpu_custom_call.1
$region0: #{tpu_custom_call.1}
  #allocation0 [shape = 'u32[]', space=smem, size = 0x4, offset = 0x4, fixed_abs, tag = 'smem constant byte address 0x4 - core index']
  #allocation1 [shape = 'u32[72,128]{1,0:T(1,128)}', space=vmem, size = 0x9000, scoped, tag = 'internal scratch']
  %s0 = inlined_call_operand.hbm [shape: f32[2,32,256], index: 0, kind: input, shape index: {}]
  %s1 = inlined_call_operand.hbm [shape: f32[32,32], index: 1, kind: input, shape index: {}]
  %s2 = inlined_call_operand.hbm [shape: f32[2,32,256], index: 2, kind: output, shape index: {}]
  %s3 = sld [smem:[#allocation0]]
  $region26: #{tpu_custom_call.1} parent=0
    _
  %s5 = ssub.s32 1, %s3
  %s6 = scalar_select 0, %s5, %s3
  $region1: #{tpu_custom_call.1} parent=0
    #allocation2 [shape = 'u8[65536]{0}', space=vmem, size = 0x10000, scoped, tag = 'input window, operand 0, single buffered']
    #allocation3 [shape = 's32[1]{0}', space=sflag, size = 0x4, scoped, tag = 'scoped memory for tpu_custom_call.1']
    #allocation4 [shape = 's32[1]{0}', space=sflag, size = 0x4, scoped, tag = 'scoped memory for tpu_custom_call.1']
    #allocation5 [shape = 'u8[16384]{0}', space=vmem, size = 0x4000, scoped, tag = 'input window, operand 1, single buffered']
    #allocation6 [shape = 's32[1]{0}', space=sflag, size = 0x4, scoped, tag = 'scoped memory for tpu_custom_call.1']
    #allocation7 [shape = 'u8[65536]{0}', space=vmem, size = 0x10000, scoped, tag = 'output window, operand 0, single buffered']
    %7 = vsyncpa [#allocation3], 0
    %8 = vsyncpa [#allocation6], 0
    %9 = vsyncpa [#allocation4], 0
    // Predicated region
    $region2: #{tpu_custom_call.1} parent=1 // pred_check
      _
    $region3: #{tpu_custom_call.1} parent=1 // pred_check_branch
      %11 = sbr.rel (0) target = $region5
    $region4: #{tpu_custom_call.1} parent=1 // pred_region
      %13 = vsyncadd [#allocation3], 0
      %s14 = sshll.u32 %s0, 4
      %s15 = int_to_ptr.hbm [resolvable:$true] %s14
      %s16 = sshll.u32 [#allocation2], 4
      %s17 = int_to_ptr.vmem [resolvable:$true] %s16
      %22 = dma.hbm_to_vmem [thread:$0]  %s15, 2048, %s17, [#allocation3], 256, 256, 16
    $region5: #{tpu_custom_call.1} parent=1 // pred_fallthru
      _
    // Predicated region
    $region6: #{tpu_custom_call.1} parent=1 // pred_check
      _
    $region7: #{tpu_custom_call.1} parent=1 // pred_check_branch
      %24 = sbr.rel (0) target = $region9
    $region8: #{tpu_custom_call.1} parent=1 // pred_region
      %26 = vsyncadd [#allocation6], 0
      %s27 = sshll.u32 %s1, 4
      %s28 = int_to_ptr.hbm [resolvable:$true] %s27
      %s29 = sshll.u32 [#allocation5], 4
      %s30 = int_to_ptr.vmem [resolvable:$true] %s29
      %35 = dma.hbm_to_vmem [thread:$0]  %s28, 512, %s30, [#allocation6], 128, 128, 8
    $region9: #{tpu_custom_call.1} parent=1 // pred_fallthru
      _
    // Predicated region
    $region10: #{tpu_custom_call.1} parent=1 // pred_check
      _
    $region11: #{tpu_custom_call.1} parent=1 // pred_check_branch
      %37 = sbr.rel (0) target = $region13
    $region12: #{tpu_custom_call.1} parent=1 // pred_region
      %39 = dma.done [#allocation3], 2048
    $region13: #{tpu_custom_call.1} parent=1 // pred_fallthru
      _
    // Predicated region
    $region14: #{tpu_custom_call.1} parent=1 // pred_check
      _
    $region15: #{tpu_custom_call.1} parent=1 // pred_check_branch
      %41 = sbr.rel (0) target = $region17
    $region16: #{tpu_custom_call.1} parent=1 // pred_region
      %43 = dma.done [#allocation6], 512
    $region17: #{tpu_custom_call.1} parent=1 // pred_fallthru
      _
    %v44 = vld [vmem:[#allocation5] sm:$0xff]
    %v45 = vld [vmem:[#allocation5 + $0x8] sm:$0xff]
    %v46 = vld [vmem:[#allocation5 + $0x10] sm:$0xff]
    %v47 = vld [vmem:[#allocation5 + $0x18] sm:$0xff]
    %v48 = vld [vmem:[#allocation2] sm:$0xff]
    %v49 = vld [vmem:[#allocation2 + $0x8] sm:$0xff]
    %v50 = vld [vmem:[#allocation2 + $0x10] sm:$0xff]
    %v51 = vld [vmem:[#allocation2 + $0x18] sm:$0xff]
    %v52 = vld [vmem:[#allocation2 + $0x20] sm:$0xff]
    %v53 = vld [vmem:[#allocation2 + $0x28] sm:$0xff]
    %v54 = vld [vmem:[#allocation2 + $0x30] sm:$0xff]
    %v55 = vld [vmem:[#allocation2 + $0x38] sm:$0xff]
    %vm56 = vcmask 261120
    %v58 = vsel %vm56, %v44, 0
    %v61 = vsel %vm56, %v45, 0
    %v64 = vsel %vm56, %v46, 0
    %v67 = vsel %vm56, %v47, 0
    %69 = vmatpush.msra.mxu0 0.0
    %70 = vmatpush.msra.mxu0 0.0
    %71 = vmatpush.msra.mxu0 0.0
    %72 = vmatpush.msra.mxu0 0.0
    %73 = vmatpush.msra.mxu0 0.0
    %74 = vmatpush.msra.mxu0 0.0
    %75 = vmatpush.msra.mxu0 0.0
    %76 = vmatpush.msra.mxu0 0.0
    %77 = vmatpush.msra.mxu0 0.0
    %78 = vmatpush.msra.mxu0 0.0
    %79 = vmatpush.msra.mxu0 0.0
    %80 = vmatpush.msra.mxu0 0.0
    %81 = vmatpush.msra.mxu0 %v54
    %82 = vmatpush.msra.mxu0 %v52
    %83 = vmatpush.msra.mxu0 %v50
    %84 = vmatpush.msra.mxu0 %v48
    %85 = vmatmul.f32.gmra.mxu0 %v58
    %v86 = vpop.f32.mrf.mxu0
    %v87 = vadd.f32 0.0, %v86
    %88 = vmatmul.f32.gmra.mxu0 %v61
    %v89 = vpop.f32.mrf.mxu0
    %v90 = vadd.f32 0.0, %v89
    %91 = vmatmul.f32.gmra.mxu0 %v64
    %v92 = vpop.f32.mrf.mxu0
    %v93 = vadd.f32 0.0, %v92
    %94 = vmatmul.f32.gmra.mxu0 %v67
    %v95 = vpop.f32.mrf.mxu0
    %v96 = vadd.f32 0.0, %v95
    %97 = vdwg.mxu0
    %98 = vmatpush.msra.mxu0 0.0
    %99 = vmatpush.msra.mxu0 0.0
    %100 = vmatpush.msra.mxu0 0.0
    %101 = vmatpush.msra.mxu0 0.0
    %102 = vmatpush.msra.mxu0 0.0
    %103 = vmatpush.msra.mxu0 0.0
    %104 = vmatpush.msra.mxu0 0.0
    %105 = vmatpush.msra.mxu0 0.0
    %106 = vmatpush.msra.mxu0 0.0
    %107 = vmatpush.msra.mxu0 0.0
    %108 = vmatpush.msra.mxu0 0.0
    %109 = vmatpush.msra.mxu0 0.0
    %110 = vmatpush.msra.mxu0 %v55
    %111 = vmatpush.msra.mxu0 %v53
    %112 = vmatpush.msra.mxu0 %v51
    %113 = vmatpush.msra.mxu0 %v49
    %114 = vmatmul.f32.gmra.mxu0 %v58
    %v115 = vpop.f32.mrf.mxu0
    %v116 = vadd.f32 0.0, %v115
    %117 = vmatmul.f32.gmra.mxu0 %v61
    %v118 = vpop.f32.mrf.mxu0
    %v119 = vadd.f32 0.0, %v118
    %120 = vmatmul.f32.gmra.mxu0 %v64
    %v121 = vpop.f32.mrf.mxu0
    %v122 = vadd.f32 0.0, %v121
    %123 = vmatmul.f32.gmra.mxu0 %v67
    %v124 = vpop.f32.mrf.mxu0
    %v125 = vadd.f32 0.0, %v124
    %126 = vdwg.mxu0
    %127 = vst [vmem:[#allocation7] sm:$0xff] %v87
    %128 = vst [vmem:[#allocation7 + $0x8] sm:$0xff] %v116
    %129 = vst [vmem:[#allocation7 + $0x10] sm:$0xff] %v90
    %130 = vst [vmem:[#allocation7 + $0x18] sm:$0xff] %v119
    %131 = vst [vmem:[#allocation7 + $0x20] sm:$0xff] %v93
    %132 = vst [vmem:[#allocation7 + $0x28] sm:$0xff] %v122
    %133 = vst [vmem:[#allocation7 + $0x30] sm:$0xff] %v96
    %134 = vst [vmem:[#allocation7 + $0x38] sm:$0xff] %v125
    %s135 = scalar_lea.vmem [#allocation2], 64
    %v136 = vld [vmem:[%s135] sm:$0xff]
    %v137 = vld [vmem:[%s135 + $0x8] sm:$0xff]
    %v138 = vld [vmem:[%s135 + $0x10] sm:$0xff]
    %v139 = vld [vmem:[%s135 + $0x18] sm:$0xff]
    %v140 = vld [vmem:[%s135 + $0x20] sm:$0xff]
    %v141 = vld [vmem:[%s135 + $0x28] sm:$0xff]
    %v142 = vld [vmem:[%s135 + $0x30] sm:$0xff]
    %v143 = vld [vmem:[%s135 + $0x38] sm:$0xff]
    %144 = vmatpush.msra.mxu0 0.0
    %145 = vmatpush.msra.mxu0 0.0
    %146 = vmatpush.msra.mxu0 0.0
    %147 = vmatpush.msra.mxu0 0.0
    %148 = vmatpush.msra.mxu0 0.0
    %149 = vmatpush.msra.mxu0 0.0
    %150 = vmatpush.msra.mxu0 0.0
    %151 = vmatpush.msra.mxu0 0.0
    %152 = vmatpush.msra.mxu0 0.0
    %153 = vmatpush.msra.mxu0 0.0
    %154 = vmatpush.msra.mxu0 0.0
    %155 = vmatpush.msra.mxu0 0.0
    %156 = vmatpush.msra.mxu0 %v142
    %157 = vmatpush.msra.mxu0 %v140
    %158 = vmatpush.msra.mxu0 %v138
    %159 = vmatpush.msra.mxu0 %v136
    %160 = vmatmul.f32.gmra.mxu0 %v58
    %v161 = vpop.f32.mrf.mxu0
    %v162 = vadd.f32 0.0, %v161
    %163 = vmatmul.f32.gmra.mxu0 %v61
    %v164 = vpop.f32.mrf.mxu0
    %v165 = vadd.f32 0.0, %v164
    %166 = vmatmul.f32.gmra.mxu0 %v64
    %v167 = vpop.f32.mrf.mxu0
    %v168 = vadd.f32 0.0, %v167
    %169 = vmatmul.f32.gmra.mxu0 %v67
    %v170 = vpop.f32.mrf.mxu0
    %v171 = vadd.f32 0.0, %v170
    %172 = vdwg.mxu0
    %173 = vmatpush.msra.mxu0 0.0
    %174 = vmatpush.msra.mxu0 0.0
    %175 = vmatpush.msra.mxu0 0.0
    %176 = vmatpush.msra.mxu0 0.0
    %177 = vmatpush.msra.mxu0 0.0
    %178 = vmatpush.msra.mxu0 0.0
    %179 = vmatpush.msra.mxu0 0.0
    %180 = vmatpush.msra.mxu0 0.0
    %181 = vmatpush.msra.mxu0 0.0
    %182 = vmatpush.msra.mxu0 0.0
    %183 = vmatpush.msra.mxu0 0.0
    %184 = vmatpush.msra.mxu0 0.0
    %185 = vmatpush.msra.mxu0 %v143
    %186 = vmatpush.msra.mxu0 %v141
    %187 = vmatpush.msra.mxu0 %v139
    %188 = vmatpush.msra.mxu0 %v137
    %189 = vmatmul.f32.gmra.mxu0 %v58
    %v190 = vpop.f32.mrf.mxu0
    %v191 = vadd.f32 0.0, %v190
    %192 = vmatmul.f32.gmra.mxu0 %v61
    %v193 = vpop.f32.mrf.mxu0
    %v194 = vadd.f32 0.0, %v193
    %195 = vmatmul.f32.gmra.mxu0 %v64
    %v196 = vpop.f32.mrf.mxu0
    %v197 = vadd.f32 0.0, %v196
    %198 = vmatmul.f32.gmra.mxu0 %v67
    %v199 = vpop.f32.mrf.mxu0
    %v200 = vadd.f32 0.0, %v199
    %201 = vdwg.mxu0
    %s202 = scalar_lea.vmem [#allocation7], 64
    %203 = vst [vmem:[%s202] sm:$0xff] %v162
    %204 = vst [vmem:[%s202 + $0x8] sm:$0xff] %v191
    %205 = vst [vmem:[%s202 + $0x10] sm:$0xff] %v165
    %206 = vst [vmem:[%s202 + $0x18] sm:$0xff] %v194
    %207 = vst [vmem:[%s202 + $0x20] sm:$0xff] %v168
    %208 = vst [vmem:[%s202 + $0x28] sm:$0xff] %v197
    %209 = vst [vmem:[%s202 + $0x30] sm:$0xff] %v171
    %210 = vst [vmem:[%s202 + $0x38] sm:$0xff] %v200
    // Predicated region
    $region18: #{tpu_custom_call.1} parent=1 // pred_check
      _
    $region19: #{tpu_custom_call.1} parent=1 // pred_check_branch
      %212 = sbr.rel (0) target = $region21
    $region20: #{tpu_custom_call.1} parent=1 // pred_region
      %214 = vsyncadd [#allocation4], 0
      %s215 = sshll.u32 [#allocation7], 4
      %s216 = int_to_ptr.vmem [resolvable:$true] %s215
      %s217 = sshll.u32 %s2, 4
      %s218 = int_to_ptr.hbm [resolvable:$true] %s217
      %223 = dma.vmem_to_hbm [thread:$0]  %s216, 2048, %s218, [#allocation4], 256, 256, 16
    $region21: #{tpu_custom_call.1} parent=1 // pred_fallthru
      _
    // Predicated region
    $region22: #{tpu_custom_call.1} parent=1 // pred_check
      _
    $region23: #{tpu_custom_call.1} parent=1 // pred_check_branch
      %225 = sbr.rel (0) target = $region25
    $region24: #{tpu_custom_call.1} parent=1 // pred_region
      %227 = dma.done [#allocation4], 2048
    $region25: #{tpu_custom_call.1} parent=1 // pred_fallthru
      _
    %228 = vsyncpa [#allocation3], 1
    %229 = vsyncpa [#allocation6], 1
    %230 = vsyncpa [#allocation4], 1

</llo_original>
